<compile_context>
chip_gen: v5e
topology: v5e:2x2
jax: 0.10.0
libtpu: 0.0.40
codegen_flags: <defaults>
</compile_context>

<pallas_src>
import jax
import jax.numpy as jnp
from jax.experimental import pallas as pl
from jax.experimental.pallas import tpu as pltpu


def _choose_tiles(H, W, K, itemsize, *, budget_bytes=24 << 20, max_th=64):
    """Pick (TH, TW).  2 inputs x 2 pipeline buffers (4 * K * TH * TW * itemsize)
    must stay under budget_bytes; prefer full-W lane-dense blocks and a TH that
    divides H (no tail masking); cap TH so the unrolled sub-chunk loop stays
    short (<= 8 sub-chunks)."""
    def fits(th, tw):
        return 4 * K * th * tw * itemsize <= budget_bytes

    top = min(max_th, (H // 8) * 8)
    # (a) TH a multiple of 8 that divides H -> no row-tail mask.
    for th in range(top, 0, -8):
        if H % th == 0 and fits(th, W):
            return th, W
    # (b) whole image height as a single (full-extent) block.
    if H <= max_th and fits(H, W):
        return H, W
    # (c) TH a multiple of 8; tail rows masked in-kernel.
    for th in range(top, 0, -8):
        if fits(th, W):
            return th, W
    # (d) K*W too large even for 8 rows (v7x-sized VMEM, huge K): tile W too
    #     (multiple of 128 lanes, tail lanes masked in-kernel).
    th = min(8, H)
    tw = max(128, (min(W, budget_bytes // (4 * K * th * itemsize)) // 128) * 128)
    return th, tw


def _make_conf_kernel(K, TH, TW, H, W, nH_per):
    row_tail = (H % TH) != 0
    col_tail = (W % TW) != 0

    def kernel(pr_ref, gt_ref, conf_ref, acc_ref):
        # pr_ref, gt_ref: (K, TH, TW) score block; conf_ref: (K, K) output block;
        # acc_ref: (K, K) f32 VMEM scratch accumulator (resident per image-half).
        sp = pl.program_id(1)
        wb = pl.program_id(2)
        hb = pl.program_id(3)

        @pl.when(jnp.logical_and(wb == 0, hb == 0))
        def _():
            acc_ref[...] = jnp.zeros_like(acc_ref)

        h_base = (sp * nH_per + hb) * TH
        w_base = wb * TW

        def argmax_slab(ref, r0, rows):
            # First-hit argmax over the K leading slabs; only an (rows, TW)
            # best/idx pair is live.  Loads are pushed into the loop so a single
            # (rows, TW) score slab is resident at a time.  Native-dtype
            # compares (bf16 is a native VALU type on v6e/v7x; Mosaic extends
            # on v5e).
            # TODO(synk): NaN scores resolve to class 0 here (v > best is false
            # for NaN), whereas np.argmax would propagate the NaN position.
            best = ref[0, r0:r0 + rows, :]
            idx = jnp.zeros((rows, TW), jnp.int32)
            for k in range(1, K):
                v = ref[k, r0:r0 + rows, :]
                better = v > best
                idx = jnp.where(better, k, idx)
                best = jnp.where(better, v, best)
            return idx

        acc = jnp.zeros((K, K), jnp.float32)
        for r0 in range(0, TH, 8):          # static loop over 8-row sub-chunks
            rows = min(8, TH - r0)
            pr_idx = argmax_slab(pr_ref, r0, rows)
            gt_idx = argmax_slab(gt_ref, r0, rows)

            if row_tail or col_tail:
                # Route invalid pixels' gt index to the out-of-range class K:
                # their one-hot row is all-zero, so they contribute nothing.
                valid = None
                if row_tail:
                    r_iota = jax.lax.broadcasted_iota(jnp.int32, (rows, TW), 0)
                    valid = (h_base + r0 + r_iota) < H
                if col_tail:
                    c_iota = jax.lax.broadcasted_iota(jnp.int32, (rows, TW), 1)
                    cvalid = (w_base + c_iota) < W
                    valid = cvalid if valid is None else jnp.logical_and(valid, cvalid)
                gt_idx = jnp.where(valid, gt_idx, K)

            # One batched bf16 one-hot contraction per 8-row sub-chunk:
            # conf[g, p] += sum_{r,w} [gt==g] * [pr==p]  (MXU, f32 accumulate).
            cls = jax.lax.broadcasted_iota(jnp.int32, (rows, K, TW), 1)
            oh_gt = (cls == gt_idx[:, None, :]).astype(jnp.bfloat16)
            oh_pr = (cls == pr_idx[:, None, :]).astype(jnp.bfloat16)
            part = jnp.einsum('rgw,rpw->rgp', oh_gt, oh_pr,
                              preferred_element_type=jnp.float32)
            acc = acc + part.sum(axis=0)

        acc_ref[...] += acc

        @pl.when(jnp.logical_and(wb == pl.num_programs(2) - 1,
                                 hb == pl.num_programs(3) - 1))
        def _():
            conf_ref[...] = acc_ref[...]

    return kernel


def confusion_matrix_pallas(y_pr, y_gt):
    """y_pr, y_gt: (N, K, H, W) score tensors (any float dtype).
    Returns the (K, K) float32 confusion matrix: rows = ground-truth class,
    cols = predicted class (per-pixel argmax over K on both inputs)."""
    assert y_pr.ndim == 4 and y_gt.ndim == 4, "expected (N, K, H, W) score tensors"
    N, K, H, W = y_pr.shape
    assert y_gt.shape == (N, K, H, W), "y_pr / y_gt shape mismatch"

    itemsize = max(jnp.dtype(y_pr.dtype).itemsize, jnp.dtype(y_gt.dtype).itemsize)
    TH, TW = _choose_tiles(H, W, K, itemsize)
    nH = pl.cdiv(H, TH)
    nW = pl.cdiv(W, TW)
    # Split the H-chunk reduction into two "parallel" halves (when even) so both
    # of v7x's TensorCores stream disjoint data even when N is tiny; it is a
    # no-op on single-TensorCore v5e/v6e.
    n_split = 2 if (nH >= 2 and nH % 2 == 0) else 1
    nH_per = nH // n_split

    block_bytes = K * TH * TW * itemsize
    # 2 inputs x 2 pipeline buffers + slack; capped at 48 MiB for v7x's 64 MiB
    # physical VMEM, raised above the 16/32 MiB scoped defaults elsewhere.
    vmem_limit = int(min(48 << 20, max(32 << 20, 4 * block_bytes + (8 << 20))))

    kernel = _make_conf_kernel(K=K, TH=TH, TW=TW, H=H, W=W, nH_per=nH_per)

    in_map = lambda n, s, w, h: (n, 0, s * nH_per + h, w)
    out_map = lambda n, s, w, h: (n, s, 0, 0)

    conf_parts = pl.pallas_call(
        kernel,
        out_shape=jax.ShapeDtypeStruct((N, n_split, K, K), jnp.float32),
        grid_spec=pltpu.PrefetchScalarGridSpec(
            num_scalar_prefetch=0,
            grid=(N, n_split, nW, nH_per),
            in_specs=[
                pl.BlockSpec((None, K, TH, TW), in_map),
                pl.BlockSpec((None, K, TH, TW), in_map),
            ],
            out_specs=pl.BlockSpec((None, None, K, K), out_map),
            scratch_shapes=[pltpu.VMEM((K, K), jnp.float32)],
        ),
        compiler_params=pltpu.CompilerParams(
            dimension_semantics=("parallel", "parallel", "arbitrary", "arbitrary"),
            vmem_limit_bytes=vmem_limit),
    )(y_pr, y_gt)

    # Per-(image, half) partials keep every f32 cell < H*W (exact below 2^24);
    # only the final sum over N can lose precision for extremely large batches.
    return conf_parts.sum(axis=(0, 1))


def mpa_metric(y_pr, y_gt, num_classes, ignore_index=None, normalized=False):
    """Mirrors MPAMetric.forward for (N, K, H, W) score inputs."""
    if isinstance(y_pr, (list, tuple)):
        y_pr = y_pr[0]
    if isinstance(y_gt, (list, tuple)):
        y_gt = y_gt[0]
    # TODO(synk): the module's alternate (N, H, W) integer-label input path is
    # not implemented; only (N, K, H, W) score tensors are handled here.
    assert y_pr.ndim == 4 and y_gt.ndim == 4
    assert y_pr.shape[1] == num_classes and y_gt.shape[1] == num_classes

    conf = confusion_matrix_pallas(y_pr, y_gt)

    if normalized:
        # TODO(synk): original repo's confusion_matrix(normalized=True) exact
        # convention not shown; row-normalization used here as the common one.
        conf = conf / jnp.maximum(conf.sum(axis=1, keepdims=True), 1e-12)

    if ignore_index is not None:
        if isinstance(ignore_index, int):
            ignore_index = (ignore_index,)
        for idx in ignore_index:
            conf = conf.at[:, idx].set(0.0)
            conf = conf.at[idx, :].set(0.0)

    tp = jnp.diag(conf)
    fp = conf.sum(axis=0) - tp
    fn = conf.sum(axis=1) - tp
    total = conf.sum()
    tn = total - tp - fn - fp
    # Faithful to the reference: ignored / absent classes contribute
    # pa = tn/total = 1.0 to the nanmean; total == 0 yields NaN.
    pa = (tp + tn) / total
    return jnp.nanmean(pa)


def _mpa_reference(y_pr, y_gt, num_classes):
    """Pure-JAX reference matching the PyTorch semantics (no Pallas)."""
    pr_idx = jnp.argmax(y_pr, axis=1).reshape(-1)
    gt_idx = jnp.argmax(y_gt, axis=1).reshape(-1)
    flat = gt_idx * num_classes + pr_idx
    conf = jnp.bincount(flat, length=num_classes * num_classes).reshape(
        num_classes, num_classes).astype(jnp.float32)
    tp = jnp.diag(conf)
    fp = conf.sum(0) - tp
    fn = conf.sum(1) - tp
    total = conf.sum()
    tn = total - tp - fn - fp
    pa = (tp + tn) / total
    return jnp.nanmean(pa)


if __name__ == "__main__":
    key = jax.random.PRNGKey(0)
    N, K, H, W = 2, 4, 16, 16
    k1, k2 = jax.random.split(key)
    y_pr = jax.random.normal(k1, (N, K, H, W), dtype=jnp.float32)
    y_gt = jax.random.normal(k2, (N, K, H, W), dtype=jnp.float32)

    mpa = jax.block_until_ready(
        mpa_metric(y_pr, y_gt, num_classes=K, ignore_index=None,
                   normalized=False))
    ref = jax.block_until_ready(_mpa_reference(y_pr, y_gt, K))

    assert jnp.allclose(mpa, ref, atol=1e-5), (mpa, ref)
    print("KERNEL_OK")
</pallas_src>

<mosaic_0001>
module attributes {stable_mosaic.version = 11 : i64} {
  func.func @kernel(%arg0: i32, %arg1: i32, %arg2: i32, %arg3: i32, %arg4: memref<1x4x16x16xf32, #tpu.memory_space<vmem>>, %arg5: memref<1x4x16x16xf32, #tpu.memory_space<vmem>>, %arg6: memref<1x1x4x4xf32, #tpu.memory_space<vmem>>, %arg7: memref<4x4xf32, #tpu.memory_space<vmem>>) attributes {dimension_semantics = [#tpu.dimension_semantics<parallel>, #tpu.dimension_semantics<parallel>, #tpu.dimension_semantics<arbitrary>, #tpu.dimension_semantics<arbitrary>], iteration_bounds = array<i64: 2, 1, 1, 1>, scalar_prefetch = 0 : i64, scratch_operands = 1 : i64, tpu.core_type = #tpu.core_type<tc>, window_params = [{transform_indices = @transform_0, window_bounds = array<i64: 1, 4, 16, 16>}, {transform_indices = @transform_1, window_bounds = array<i64: 1, 4, 16, 16>}, {transform_indices = @transform_2, window_bounds = array<i64: 1, 1, 4, 4>}]} {
    %c0_i32 = arith.constant 0 : i32
    %0 = arith.cmpi eq, %arg2, %c0_i32 : i32
    %c0_i32_0 = arith.constant 0 : i32
    %1 = arith.cmpi eq, %arg3, %c0_i32_0 : i32
    %2 = arith.andi %0, %1 : i1
    %3 = arith.extui %2 : i1 to i32
    %c0_i32_1 = arith.constant 0 : i32
    %4 = arith.cmpi ne, %3, %c0_i32_1 : i32
    scf.if %4 {
      %cst_85 = arith.constant 0.000000e+00 : f32
      %126 = vector.broadcast %cst_85 : f32 to vector<4x4xf32>
      %c0_86 = arith.constant 0 : index
      %c0_87 = arith.constant 0 : index
      %127 = vector.load %arg7[%c0_86, %c0_87] : memref<4x4xf32, #tpu.memory_space<vmem>>, vector<4x4xf32>
      tpu.vector_store %arg7[%c0_86, %c0_87], %126 {strides = array<i32>} : memref<4x4xf32, #tpu.memory_space<vmem>>, vector<4x4xf32>,
    } else {
    }
    %cst = arith.constant 0.000000e+00 : f32
    %5 = vector.broadcast %cst : f32 to vector<4x4xf32>
    %c0 = arith.constant 0 : index
    %c0_2 = arith.constant 0 : index
    %c0_3 = arith.constant 0 : index
    %c0_4 = arith.constant 0 : index
    %6 = vector.load %arg4[%c0, %c0_2, %c0_3, %c0_4] : memref<1x4x16x16xf32, #tpu.memory_space<vmem>>, vector<1x1x8x16xf32>
    %7 = vector.shape_cast %6 : vector<1x1x8x16xf32> to vector<8x16xf32>
    %c0_i32_5 = arith.constant 0 : i32
    %8 = vector.broadcast %c0_i32_5 : i32 to vector<8x16xi32>
    %c0_6 = arith.constant 0 : index
    %c1 = arith.constant 1 : index
    %c0_7 = arith.constant 0 : index
    %c0_8 = arith.constant 0 : index
    %9 = vector.load %arg4[%c0_6, %c1, %c0_7, %c0_8] : memref<1x4x16x16xf32, #tpu.memory_space<vmem>>, vector<1x1x8x16xf32>
    %10 = vector.shape_cast %9 : vector<1x1x8x16xf32> to vector<8x16xf32>
    %11 = arith.cmpf ogt, %10, %7 : vector<8x16xf32>
    %c1_i32 = arith.constant 1 : i32
    %12 = vector.broadcast %c1_i32 : i32 to vector<8x16xi32>
    %13 = arith.select %11, %12, %8 : vector<8x16xi1>, vector<8x16xi32>
    %14 = arith.select %11, %10, %7 : vector<8x16xi1>, vector<8x16xf32>
    %c0_9 = arith.constant 0 : index
    %c2 = arith.constant 2 : index
    %c0_10 = arith.constant 0 : index
    %c0_11 = arith.constant 0 : index
    %15 = vector.load %arg4[%c0_9, %c2, %c0_10, %c0_11] : memref<1x4x16x16xf32, #tpu.memory_space<vmem>>, vector<1x1x8x16xf32>
    %16 = vector.shape_cast %15 : vector<1x1x8x16xf32> to vector<8x16xf32>
    %17 = arith.cmpf ogt, %16, %14 : vector<8x16xf32>
    %c2_i32 = arith.constant 2 : i32
    %18 = vector.broadcast %c2_i32 : i32 to vector<8x16xi32>
    %19 = arith.select %17, %18, %13 : vector<8x16xi1>, vector<8x16xi32>
    %20 = arith.select %17, %16, %14 : vector<8x16xi1>, vector<8x16xf32>
    %c0_12 = arith.constant 0 : index
    %c3 = arith.constant 3 : index
    %c0_13 = arith.constant 0 : index
    %c0_14 = arith.constant 0 : index
    %21 = vector.load %arg4[%c0_12, %c3, %c0_13, %c0_14] : memref<1x4x16x16xf32, #tpu.memory_space<vmem>>, vector<1x1x8x16xf32>
    %22 = vector.shape_cast %21 : vector<1x1x8x16xf32> to vector<8x16xf32>
    %23 = arith.cmpf ogt, %22, %20 : vector<8x16xf32>
    %c3_i32 = arith.constant 3 : i32
    %24 = vector.broadcast %c3_i32 : i32 to vector<8x16xi32>
    %25 = arith.select %23, %24, %19 : vector<8x16xi1>, vector<8x16xi32>
    %c0_15 = arith.constant 0 : index
    %c0_16 = arith.constant 0 : index
    %c0_17 = arith.constant 0 : index
    %c0_18 = arith.constant 0 : index
    %26 = vector.load %arg5[%c0_15, %c0_16, %c0_17, %c0_18] : memref<1x4x16x16xf32, #tpu.memory_space<vmem>>, vector<1x1x8x16xf32>
    %27 = vector.shape_cast %26 : vector<1x1x8x16xf32> to vector<8x16xf32>
    %c0_i32_19 = arith.constant 0 : i32
    %28 = vector.broadcast %c0_i32_19 : i32 to vector<8x16xi32>
    %c0_20 = arith.constant 0 : index
    %c1_21 = arith.constant 1 : index
    %c0_22 = arith.constant 0 : index
    %c0_23 = arith.constant 0 : index
    %29 = vector.load %arg5[%c0_20, %c1_21, %c0_22, %c0_23] : memref<1x4x16x16xf32, #tpu.memory_space<vmem>>, vector<1x1x8x16xf32>
    %30 = vector.shape_cast %29 : vector<1x1x8x16xf32> to vector<8x16xf32>
    %31 = arith.cmpf ogt, %30, %27 : vector<8x16xf32>
    %c1_i32_24 = arith.constant 1 : i32
    %32 = vector.broadcast %c1_i32_24 : i32 to vector<8x16xi32>
    %33 = arith.select %31, %32, %28 : vector<8x16xi1>, vector<8x16xi32>
    %34 = arith.select %31, %30, %27 : vector<8x16xi1>, vector<8x16xf32>
    %c0_25 = arith.constant 0 : index
    %c2_26 = arith.constant 2 : index
    %c0_27 = arith.constant 0 : index
    %c0_28 = arith.constant 0 : index
    %35 = vector.load %arg5[%c0_25, %c2_26, %c0_27, %c0_28] : memref<1x4x16x16xf32, #tpu.memory_space<vmem>>, vector<1x1x8x16xf32>
    %36 = vector.shape_cast %35 : vector<1x1x8x16xf32> to vector<8x16xf32>
    %37 = arith.cmpf ogt, %36, %34 : vector<8x16xf32>
    %c2_i32_29 = arith.constant 2 : i32
    %38 = vector.broadcast %c2_i32_29 : i32 to vector<8x16xi32>
    %39 = arith.select %37, %38, %33 : vector<8x16xi1>, vector<8x16xi32>
    %40 = arith.select %37, %36, %34 : vector<8x16xi1>, vector<8x16xf32>
    %c0_30 = arith.constant 0 : index
    %c3_31 = arith.constant 3 : index
    %c0_32 = arith.constant 0 : index
    %c0_33 = arith.constant 0 : index
    %41 = vector.load %arg5[%c0_30, %c3_31, %c0_32, %c0_33] : memref<1x4x16x16xf32, #tpu.memory_space<vmem>>, vector<1x1x8x16xf32>
    %42 = vector.shape_cast %41 : vector<1x1x8x16xf32> to vector<8x16xf32>
    %43 = arith.cmpf ogt, %42, %40 : vector<8x16xf32>
    %c3_i32_34 = arith.constant 3 : i32
    %44 = vector.broadcast %c3_i32_34 : i32 to vector<8x16xi32>
    %45 = arith.select %43, %44, %39 : vector<8x16xi1>, vector<8x16xi32>
    %46 = tpu.iota {dimensions = array<i32: 1>} : vector<8x4x16xi32>
    %47 = vector.shape_cast %45 : vector<8x16xi32> to vector<8x1x16xi32>
    %48 = vector.broadcast %47 : vector<8x1x16xi32> to vector<8x4x16xi32>
    %49 = arith.cmpi eq, %46, %48 : vector<8x4x16xi32>
    %50 = arith.extui %49 : vector<8x4x16xi1> to vector<8x4x16xi32>
    %51 = arith.sitofp %50 : vector<8x4x16xi32> to vector<8x4x16xf32>
    %52 = arith.truncf %51 : vector<8x4x16xf32> to vector<8x4x16xbf16>
    %53 = vector.shape_cast %25 : vector<8x16xi32> to vector<8x1x16xi32>
    %54 = vector.broadcast %53 : vector<8x1x16xi32> to vector<8x4x16xi32>
    %55 = arith.cmpi eq, %46, %54 : vector<8x4x16xi32>
    %56 = arith.extui %55 : vector<8x4x16xi1> to vector<8x4x16xi32>
    %57 = arith.sitofp %56 : vector<8x4x16xi32> to vector<8x4x16xf32>
    %58 = arith.truncf %57 : vector<8x4x16xf32> to vector<8x4x16xbf16>
    "tpu.trace_start"() <{level = 10 : i32, message = "rgw,rpw->rgp"}> : () -> ()
    %cst_35 = arith.constant dense<0.000000e+00> : vector<8x4x4xf32>
    %59 = tpu.matmul %52, %58, %cst_35 {dimension_numbers = #tpu.dot_dimension_numbers<[2], [2], [1], [1], [0, 0, 0, 1, 1, 1], [0], [0]>} : vector<8x4x16xbf16>, vector<8x4x16xbf16>, vector<8x4x4xf32> -> vector<8x4x4xf32>
    "tpu.trace_stop"() : () -> ()
    %cst_36 = arith.constant dense<0.000000e+00> : vector<4x4xf32>
    %60 = vector.multi_reduction <add>, %59, %cst_36 [0] : vector<8x4x4xf32> to vector<4x4xf32>
    %61 = arith.addf %5, %60 : vector<4x4xf32>
    %c0_37 = arith.constant 0 : index
    %c0_38 = arith.constant 0 : index
    %c8 = arith.constant 8 : index
    %c0_39 = arith.constant 0 : index
    %62 = vector.load %arg4[%c0_37, %c0_38, %c8, %c0_39] : memref<1x4x16x16xf32, #tpu.memory_space<vmem>>, vector<1x1x8x16xf32>
    %63 = vector.shape_cast %62 : vector<1x1x8x16xf32> to vector<8x16xf32>
    %c0_i32_40 = arith.constant 0 : i32
    %64 = vector.broadcast %c0_i32_40 : i32 to vector<8x16xi32>
    %c0_41 = arith.constant 0 : index
    %c1_42 = arith.constant 1 : index
    %c8_43 = arith.constant 8 : index
    %c0_44 = arith.constant 0 : index
    %65 = vector.load %arg4[%c0_41, %c1_42, %c8_43, %c0_44] : memref<1x4x16x16xf32, #tpu.memory_space<vmem>>, vector<1x1x8x16xf32>
    %66 = vector.shape_cast %65 : vector<1x1x8x16xf32> to vector<8x16xf32>
    %67 = arith.cmpf ogt, %66, %63 : vector<8x16xf32>
    %c1_i32_45 = arith.constant 1 : i32
    %68 = vector.broadcast %c1_i32_45 : i32 to vector<8x16xi32>
    %69 = arith.select %67, %68, %64 : vector<8x16xi1>, vector<8x16xi32>
    %70 = arith.select %67, %66, %63 : vector<8x16xi1>, vector<8x16xf32>
    %c0_46 = arith.constant 0 : index
    %c2_47 = arith.constant 2 : index
    %c8_48 = arith.constant 8 : index
    %c0_49 = arith.constant 0 : index
    %71 = vector.load %arg4[%c0_46, %c2_47, %c8_48, %c0_49] : memref<1x4x16x16xf32, #tpu.memory_space<vmem>>, vector<1x1x8x16xf32>
    %72 = vector.shape_cast %71 : vector<1x1x8x16xf32> to vector<8x16xf32>
    %73 = arith.cmpf ogt, %72, %70 : vector<8x16xf32>
    %c2_i32_50 = arith.constant 2 : i32
    %74 = vector.broadcast %c2_i32_50 : i32 to vector<8x16xi32>
    %75 = arith.select %73, %74, %69 : vector<8x16xi1>, vector<8x16xi32>
    %76 = arith.select %73, %72, %70 : vector<8x16xi1>, vector<8x16xf32>
    %c0_51 = arith.constant 0 : index
    %c3_52 = arith.constant 3 : index
    %c8_53 = arith.constant 8 : index
    %c0_54 = arith.constant 0 : index
    %77 = vector.load %arg4[%c0_51, %c3_52, %c8_53, %c0_54] : memref<1x4x16x16xf32, #tpu.memory_space<vmem>>, vector<1x1x8x16xf32>
    %78 = vector.shape_cast %77 : vector<1x1x8x16xf32> to vector<8x16xf32>
    %79 = arith.cmpf ogt, %78, %76 : vector<8x16xf32>
    %c3_i32_55 = arith.constant 3 : i32
    %80 = vector.broadcast %c3_i32_55 : i32 to vector<8x16xi32>
    %81 = arith.select %79, %80, %75 : vector<8x16xi1>, vector<8x16xi32>
    %c0_56 = arith.constant 0 : index
    %c0_57 = arith.constant 0 : index
    %c8_58 = arith.constant 8 : index
    %c0_59 = arith.constant 0 : index
    %82 = vector.load %arg5[%c0_56, %c0_57, %c8_58, %c0_59] : memref<1x4x16x16xf32, #tpu.memory_space<vmem>>, vector<1x1x8x16xf32>
    %83 = vector.shape_cast %82 : vector<1x1x8x16xf32> to vector<8x16xf32>
    %c0_i32_60 = arith.constant 0 : i32
    %84 = vector.broadcast %c0_i32_60 : i32 to vector<8x16xi32>
    %c0_61 = arith.constant 0 : index
    %c1_62 = arith.constant 1 : index
    %c8_63 = arith.constant 8 : index
    %c0_64 = arith.constant 0 : index
    %85 = vector.load %arg5[%c0_61, %c1_62, %c8_63, %c0_64] : memref<1x4x16x16xf32, #tpu.memory_space<vmem>>, vector<1x1x8x16xf32>
    %86 = vector.shape_cast %85 : vector<1x1x8x16xf32> to vector<8x16xf32>
    %87 = arith.cmpf ogt, %86, %83 : vector<8x16xf32>
    %c1_i32_65 = arith.constant 1 : i32
    %88 = vector.broadcast %c1_i32_65 : i32 to vector<8x16xi32>
    %89 = arith.select %87, %88, %84 : vector<8x16xi1>, vector<8x16xi32>
    %90 = arith.select %87, %86, %83 : vector<8x16xi1>, vector<8x16xf32>
    %c0_66 = arith.constant 0 : index
    %c2_67 = arith.constant 2 : index
    %c8_68 = arith.constant 8 : index
    %c0_69 = arith.constant 0 : index
    %91 = vector.load %arg5[%c0_66, %c2_67, %c8_68, %c0_69] : memref<1x4x16x16xf32, #tpu.memory_space<vmem>>, vector<1x1x8x16xf32>
    %92 = vector.shape_cast %91 : vector<1x1x8x16xf32> to vector<8x16xf32>
    %93 = arith.cmpf ogt, %92, %90 : vector<8x16xf32>
    %c2_i32_70 = arith.constant 2 : i32
    %94 = vector.broadcast %c2_i32_70 : i32 to vector<8x16xi32>
    %95 = arith.select %93, %94, %89 : vector<8x16xi1>, vector<8x16xi32>
    %96 = arith.select %93, %92, %90 : vector<8x16xi1>, vector<8x16xf32>
    %c0_71 = arith.constant 0 : index
    %c3_72 = arith.constant 3 : index
    %c8_73 = arith.constant 8 : index
    %c0_74 = arith.constant 0 : index
    %97 = vector.load %arg5[%c0_71, %c3_72, %c8_73, %c0_74] : memref<1x4x16x16xf32, #tpu.memory_space<vmem>>, vector<1x1x8x16xf32>
    %98 = vector.shape_cast %97 : vector<1x1x8x16xf32> to vector<8x16xf32>
    %99 = arith.cmpf ogt, %98, %96 : vector<8x16xf32>
    %c3_i32_75 = arith.constant 3 : i32
    %100 = vector.broadcast %c3_i32_75 : i32 to vector<8x16xi32>
    %101 = arith.select %99, %100, %95 : vector<8x16xi1>, vector<8x16xi32>
    %102 = tpu.iota {dimensions = array<i32: 1>} : vector<8x4x16xi32>
    %103 = vector.shape_cast %101 : vector<8x16xi32> to vector<8x1x16xi32>
    %104 = vector.broadcast %103 : vector<8x1x16xi32> to vector<8x4x16xi32>
    %105 = arith.cmpi eq, %102, %104 : vector<8x4x16xi32>
    %106 = arith.extui %105 : vector<8x4x16xi1> to vector<8x4x16xi32>
    %107 = arith.sitofp %106 : vector<8x4x16xi32> to vector<8x4x16xf32>
    %108 = arith.truncf %107 : vector<8x4x16xf32> to vector<8x4x16xbf16>
    %109 = vector.shape_cast %81 : vector<8x16xi32> to vector<8x1x16xi32>
    %110 = vector.broadcast %109 : vector<8x1x16xi32> to vector<8x4x16xi32>
    %111 = arith.cmpi eq, %102, %110 : vector<8x4x16xi32>
    %112 = arith.extui %111 : vector<8x4x16xi1> to vector<8x4x16xi32>
    %113 = arith.sitofp %112 : vector<8x4x16xi32> to vector<8x4x16xf32>
    %114 = arith.truncf %113 : vector<8x4x16xf32> to vector<8x4x16xbf16>
    "tpu.trace_start"() <{level = 10 : i32, message = "rgw,rpw->rgp"}> : () -> ()
    %cst_76 = arith.constant dense<0.000000e+00> : vector<8x4x4xf32>
    %115 = tpu.matmul %108, %114, %cst_76 {dimension_numbers = #tpu.dot_dimension_numbers<[2], [2], [1], [1], [0, 0, 0, 1, 1, 1], [0], [0]>} : vector<8x4x16xbf16>, vector<8x4x16xbf16>, vector<8x4x4xf32> -> vector<8x4x4xf32>
    "tpu.trace_stop"() : () -> ()
    %cst_77 = arith.constant dense<0.000000e+00> : vector<4x4xf32>
    %116 = vector.multi_reduction <add>, %115, %cst_77 [0] : vector<8x4x4xf32> to vector<4x4xf32>
    %117 = arith.addf %61, %116 : vector<4x4xf32>
    %c0_78 = arith.constant 0 : index
    %c0_79 = arith.constant 0 : index
    %118 = vector.load %arg7[%c0_78, %c0_79] : memref<4x4xf32, #tpu.memory_space<vmem>>, vector<4x4xf32>
    %119 = arith.addf %118, %117 : vector<4x4xf32>
    %c0_80 = arith.constant 0 : index
    %c0_81 = arith.constant 0 : index
    %120 = vector.load %arg7[%c0_80, %c0_81] : memref<4x4xf32, #tpu.memory_space<vmem>>, vector<4x4xf32>
    tpu.vector_store %arg7[%c0_80, %c0_81], %119 {strides = array<i32>} : memref<4x4xf32, #tpu.memory_space<vmem>>, vector<4x4xf32>,
    %c0_i32_82 = arith.constant 0 : i32
    %121 = arith.cmpi eq, %arg2, %c0_i32_82 : i32
    %c0_i32_83 = arith.constant 0 : i32
    %122 = arith.cmpi eq, %arg3, %c0_i32_83 : i32
    %123 = arith.andi %121, %122 : i1
    %124 = arith.extui %123 : i1 to i32
    %c0_i32_84 = arith.constant 0 : i32
    %125 = arith.cmpi ne, %124, %c0_i32_84 : i32
    scf.if %125 {
      %c0_85 = arith.constant 0 : index
      %c0_86 = arith.constant 0 : index
      %126 = vector.load %arg7[%c0_85, %c0_86] : memref<4x4xf32, #tpu.memory_space<vmem>>, vector<4x4xf32>
      %c0_87 = arith.constant 0 : index
      %c0_88 = arith.constant 0 : index
      %c0_89 = arith.constant 0 : index
      %c0_90 = arith.constant 0 : index
      %127 = vector.load %arg6[%c0_87, %c0_88, %c0_89, %c0_90] : memref<1x1x4x4xf32, #tpu.memory_space<vmem>>, vector<1x1x4x4xf32>
      %128 = vector.shape_cast %127 : vector<1x1x4x4xf32> to vector<4x4xf32>
      %129 = vector.shape_cast %126 : vector<4x4xf32> to vector<1x1x4x4xf32>
      tpu.vector_store %arg6[%c0_87, %c0_88, %c0_89, %c0_90], %129 {strides = array<i32>} : memref<1x1x4x4xf32, #tpu.memory_space<vmem>>, vector<1x1x4x4xf32>,
    } else {
    }
    return
  }
  func.func @transform_0(%arg0: i32, %arg1: i32, %arg2: i32, %arg3: i32) -> (i32, i32, i32, i32) {
    %c1_i32 = arith.constant 1 : i32
    %0 = arith.muli %arg1, %c1_i32 : i32
    %1 = arith.addi %0, %arg3 : i32
    %c0_i32 = arith.constant 0 : i32
    %c0_i32_0 = arith.constant 0 : i32
    return %arg0, %c0_i32, %1, %arg2 : i32, i32, i32, i32
  }
  func.func @transform_1(%arg0: i32, %arg1: i32, %arg2: i32, %arg3: i32) -> (i32, i32, i32, i32) {
    %c1_i32 = arith.constant 1 : i32
    %0 = arith.muli %arg1, %c1_i32 : i32
    %1 = arith.addi %0, %arg3 : i32
    %c0_i32 = arith.constant 0 : i32
    %c0_i32_0 = arith.constant 0 : i32
    return %arg0, %c0_i32, %1, %arg2 : i32, i32, i32, i32
  }
  func.func @transform_2(%arg0: i32, %arg1: i32, %arg2: i32, %arg3: i32) -> (i32, i32, i32, i32) {
    %c0_i32 = arith.constant 0 : i32
    %c0_i32_0 = arith.constant 0 : i32
    %c0_i32_1 = arith.constant 0 : i32
    return %arg0, %arg1, %c0_i32, %c0_i32_0 : i32, i32, i32, i32
  }
}

</mosaic_0001>

<llo_original>
// kernel: tpu_custom_call.1
$region0: #{tpu_custom_call.1}
  #allocation0 [shape = 'u32[]', space=smem, size = 0x4, offset = 0x4, fixed_abs, tag = 'smem constant byte address 0x4 - core index']
  #allocation1 [shape = 'u32[72,128]{1,0:T(1,128)}', space=vmem, size = 0x9000, scoped, tag = 'internal scratch']
  #allocation2 [shape = 'f32[4,4]{1,0:T(4,128)}', space=vmem, size = 0x800, scoped, tag = 'scratch operand']
  %s0 = inlined_call_operand.hbm [shape: f32[2,4,16,16], index: 0, kind: input, shape index: {}]
  %s1 = inlined_call_operand.hbm [shape: f32[2,4,16,16], index: 1, kind: input, shape index: {}]
  %s2 = inlined_call_operand.hbm [shape: f32[2,1,4,4], index: 2, kind: output, shape index: {}]
  %s3 = sld [smem:[#allocation0]]
  $region57: #{tpu_custom_call.1} parent=0
    _
  %s5 = ssub.s32 1, %s3
  %s6 = scalar_select 0, %s5, %s3
  $region1: #{tpu_custom_call.1} parent=0
    #allocation3 [shape = 'u8[65536]{0}', space=vmem, size = 0x10000, scoped, tag = 'input window, operand 0']
    #allocation4 [shape = 's32[2]{0}', space=sflag, size = 0x8, scoped, tag = 'scoped memory for tpu_custom_call.1']
    #allocation5 [shape = 's32[2]{0}', space=sflag, size = 0x8, scoped, tag = 'scoped memory for tpu_custom_call.1']
    #allocation6 [shape = 'u8[65536]{0}', space=vmem, size = 0x10000, scoped, tag = 'input window, operand 1']
    #allocation7 [shape = 's32[2]{0}', space=sflag, size = 0x8, scoped, tag = 'scoped memory for tpu_custom_call.1']
    #allocation8 [shape = 'u8[4096]{0}', space=vmem, size = 0x1000, scoped, tag = 'output window, operand 0']
    %7 = vsyncpa [#allocation4], 0
    %s8 = scalar_lea.sflag [#allocation4], 1
    %9 = vsyncpa %s8, 0
    %10 = vsyncpa [#allocation7], 0
    %s11 = scalar_lea.sflag [#allocation7], 1
    %12 = vsyncpa %s11, 0
    %13 = vsyncpa [#allocation5], 0
    %s14 = scalar_lea.sflag [#allocation5], 1
    %15 = vsyncpa %s14, 0
    loop: start=0, step=1, limit=4
    $region2: #{tpu_custom_call.1} parent=1 // loop_pre_header
      _
    $region3: #{tpu_custom_call.1} parent=1 // loop_header
      %s17 = sphi 0, %s21
      %p18 = scmp.ge.s32.totalorder %s17, 4
      %s24 = sphi 0, %s50
      %s25 = sphi 0, %s46
      %s26 = sphi 0, %s42
      %s27 = sphi 0, %s38
      %s28 = sphi 0, %s24
      %s29 = sphi 0, %s25
      %s30 = sphi 0, %s26
      %s31 = sphi 0, %s27
      %s32 = sphi 0, %s28
      %s33 = sphi 0, %s29
      %s34 = sphi 0, %s30
      %s35 = sphi 0, %s31
      %s59 = sphi 0, %s61
      %s62 = sphi 0, %s59
      %s63 = sphi 0, %s62
      %s79 = sphi 0, %s63
      %s91 = sphi 0, %s93
      %s94 = sphi 0, %s91
      %s95 = sphi 0, %s94
      %s111 = sphi 0, %s95
      %s119 = sphi 0, %s121
      %s122 = sphi 0, %s119
      %s123 = sphi 0, %s122
      %s139 = sphi 0, %s123
    $region4: #{tpu_custom_call.1} parent=1 // loop_header_branch
      %20 = sbr.rel (%p18) target = $region8
    $region5: #{tpu_custom_call.1} parent=1 // loop_body
      %s22 = ssub.s32 %s17, 1
      %s23 = ssub.s32 %s17, 2
      %s36 = sadd.s32 1, %s27
      %p37 = scmp.ge.s32.totalorder %s36, 1
      %s38 = scalar_select %p37, 0, %s36
      %s39 = sadd.s32 1, %s26
      %s40 = scalar_select %p37, %s39, %s26
      %p41 = scmp.ge.s32.totalorder %s40, 1
      %s42 = scalar_select %p41, 0, %s40
      %s43 = sadd.s32 1, %s25
      %s44 = scalar_select %p41, %s43, %s25
      %p45 = scmp.ge.s32.totalorder %s44, 1
      %s46 = scalar_select %p45, 0, %s44
      %s47 = sadd.s32 1, %s24
      %s48 = scalar_select %p45, %s47, %s24
      %p49 = scmp.ge.s32.totalorder %s48, 2
      %s50 = scalar_select %p49, 0, %s48
      %s51 = sadd.s32 %s25, %s27
      %s52 = sadd.s32 %s46, %s38
      %s53 = ssub.s32 %s24, %s50
      %s54 = ssub.s32 %s51, %s52
      %s55 = sor.u32 %s53, %s54
      %s56 = ssub.s32 %s26, %s42
      %s57 = sor.u32 %s55, %s56
      %p58 = scmp.eq.s32.totalorder %s57, 0
      %s60 = sadd.s32 %s59, 1
      %s61 = scalar_select %p58, %s59, %s60
      %p64 = pneg %p58
      %p65 = scmp.eq.s32.totalorder %s17, 1
      %p66 = por %p64, %p65
      %p67 = scmp.ne.s32.totalorder %s59, %s62
      %p68 = scmp.eq.s32.totalorder %s17, 0
      %p69 = por %p67, %p68
      %p70 = scmp.ne.s32.totalorder %s59, %s62
      %p71 = scmp.eq.s32.totalorder %s22, 1
      %p72 = por %p70, %p71
      %p73 = scmp.ne.s32.totalorder %s62, %s63
      %p74 = scmp.eq.s32.totalorder %s22, 0
      %p75 = por %p73, %p74
      %p76 = scmp.ne.s32.totalorder %s62, %s63
      %p77 = scmp.eq.s32.totalorder %s23, 1
      %p78 = por %p76, %p77
      %p80 = scmp.ne.s32.totalorder %s63, %s79
      %p81 = scmp.eq.s32.totalorder %s23, 0
      %p82 = por %p80, %p81
      %s83 = sadd.s32 %s25, %s27
      %s84 = sadd.s32 %s46, %s38
      %s85 = ssub.s32 %s24, %s50
      %s86 = ssub.s32 %s83, %s84
      %s87 = sor.u32 %s85, %s86
      %s88 = ssub.s32 %s26, %s42
      %s89 = sor.u32 %s87, %s88
      %p90 = scmp.eq.s32.totalorder %s89, 0
      %s92 = sadd.s32 %s91, 1
      %s93 = scalar_select %p90, %s91, %s92
      %p96 = pneg %p90
      %p97 = scmp.eq.s32.totalorder %s17, 1
      %p98 = por %p96, %p97
      %p99 = scmp.ne.s32.totalorder %s91, %s94
      %p100 = scmp.eq.s32.totalorder %s17, 0
      %p101 = por %p99, %p100
      %p102 = scmp.ne.s32.totalorder %s91, %s94
      %p103 = scmp.eq.s32.totalorder %s22, 1
      %p104 = por %p102, %p103
      %p105 = scmp.ne.s32.totalorder %s94, %s95
      %p106 = scmp.eq.s32.totalorder %s22, 0
      %p107 = por %p105, %p106
      %p108 = scmp.ne.s32.totalorder %s94, %s95
      %p109 = scmp.eq.s32.totalorder %s23, 1
      %p110 = por %p108, %p109
      %p112 = scmp.ne.s32.totalorder %s95, %s111
      %p113 = scmp.eq.s32.totalorder %s23, 0
      %p114 = por %p112, %p113
      %s115 = ssub.s32 %s24, %s50
      %s116 = ssub.s32 %s25, %s46
      %s117 = sor.u32 %s115, %s116
      %p118 = scmp.eq.s32.totalorder %s117, 0
      %s120 = sadd.s32 %s119, 1
      %s121 = scalar_select %p118, %s119, %s120
      %p124 = pneg %p118
      %p125 = scmp.eq.s32.totalorder %s17, 1
      %p126 = por %p124, %p125
      %p127 = scmp.ne.s32.totalorder %s119, %s122
      %p128 = scmp.eq.s32.totalorder %s17, 0
      %p129 = por %p127, %p128
      %p130 = scmp.ne.s32.totalorder %s119, %s122
      %p131 = scmp.eq.s32.totalorder %s22, 1
      %p132 = por %p130, %p131
      %p133 = scmp.ne.s32.totalorder %s122, %s123
      %p134 = scmp.eq.s32.totalorder %s22, 0
      %p135 = por %p133, %p134
      %p136 = scmp.ne.s32.totalorder %s122, %s123
      %p137 = scmp.eq.s32.totalorder %s23, 1
      %p138 = por %p136, %p137
      %p140 = scmp.ne.s32.totalorder %s123, %s139
      %p141 = scmp.eq.s32.totalorder %s23, 0
      %p142 = por %p140, %p141
      %p143 = scmp.le.s32.totalorder 1, %s17
      %p144 = scmp.lt.s32.totalorder %s17, 3
      %p145 = pnand %p143, %p144
      %p146 = pneg %p145
      // Predicated region
      $region9: #{tpu_custom_call.1} parent=5 // pred_check
        _
      $region10: #{tpu_custom_call.1} parent=5 // pred_check_branch
        %148 = sbr.rel (%p145) target = $region12
      $region11: #{tpu_custom_call.1} parent=5 // pred_region
        %s149 = ssub.s32 %s17, 1
      $region12: #{tpu_custom_call.1} parent=5 // pred_fallthru
        _
      %p150 = scmp.lt.s32.totalorder %s17, 2
      // Predicated region
      $region13: #{tpu_custom_call.1} parent=5 // pred_check
        %p151 = pneg %p150
      $region14: #{tpu_custom_call.1} parent=5 // pred_check_branch
        %153 = sbr.rel (%p151) target = $region16
      $region15: #{tpu_custom_call.1} parent=5 // pred_region
        // Predicated region
        $region17: #{tpu_custom_call.1} parent=15 // pred_check
          %p154 = pneg %p69
        $region18: #{tpu_custom_call.1} parent=15 // pred_check_branch
          %156 = sbr.rel (%p154) target = $region20
        $region19: #{tpu_custom_call.1} parent=15 // pred_region
          %s157 = sand.u32 %s59, 1
          %s158 = scalar_lea.sflag [#allocation4], %s157
          %s159 = sand.u32 %s59, 1
          %s160 = smul.addr %s159, 64
          %s161 = scalar_lea.vmem [#allocation3], %s160
          %s162 = sadd.s32 %s25, %s27
          %s163 = smul.u32 2, %s162
          %165 = vsyncadd %s158, 0
          %s166 = sadd.s32 %s26, %s163
          %s167 = smul.addr %s24, 8
          %s168 = sadd.s32 %s166, %s167
          %s169 = smul.addr %s168, 8
          %s170 = scalar_lea.hbm %s0, %s169
          %s171 = sshll.u32 %s170, 4
          %s172 = int_to_ptr.hbm [resolvable:$true] %s171
          %s173 = sshll.u32 %s161, 4
          %s174 = int_to_ptr.vmem [resolvable:$true] %s173
          %179 = dma.hbm_to_vmem [thread:$0]  %s172, 1024, %s174, %s158, 128, 128, 8
        $region20: #{tpu_custom_call.1} parent=15 // pred_fallthru
          _
        // Predicated region
        $region21: #{tpu_custom_call.1} parent=15 // pred_check
          %p180 = pneg %p101
        $region22: #{tpu_custom_call.1} parent=15 // pred_check_branch
          %182 = sbr.rel (%p180) target = $region24
        $region23: #{tpu_custom_call.1} parent=15 // pred_region
          %s183 = sand.u32 %s91, 1
          %s184 = scalar_lea.sflag [#allocation7], %s183
          %s185 = sand.u32 %s91, 1
          %s186 = smul.addr %s185, 64
          %s187 = scalar_lea.vmem [#allocation6], %s186
          %s188 = sadd.s32 %s25, %s27
          %s189 = smul.u32 2, %s188
          %191 = vsyncadd %s184, 0
          %s192 = sadd.s32 %s26, %s189
          %s193 = smul.addr %s24, 8
          %s194 = sadd.s32 %s192, %s193
          %s195 = smul.addr %s194, 8
          %s196 = scalar_lea.hbm %s1, %s195
          %s197 = sshll.u32 %s196, 4
          %s198 = int_to_ptr.hbm [resolvable:$true] %s197
          %s199 = sshll.u32 %s187, 4
          %s200 = int_to_ptr.vmem [resolvable:$true] %s199
          %205 = dma.hbm_to_vmem [thread:$0]  %s198, 1024, %s200, %s184, 128, 128, 8
        $region24: #{tpu_custom_call.1} parent=15 // pred_fallthru
          _
      $region16: #{tpu_custom_call.1} parent=5 // pred_fallthru
        _
      %p206 = scmp.le.s32.totalorder 1, %s17
      %p207 = scmp.lt.s32.totalorder %s17, 3
      %p208 = pnand %p206, %p207
      %p209 = pneg %p208
      // Predicated region
      $region25: #{tpu_custom_call.1} parent=5 // pred_check
        _
      $region26: #{tpu_custom_call.1} parent=5 // pred_check_branch
        %211 = sbr.rel (%p208) target = $region28
      $region27: #{tpu_custom_call.1} parent=5 // pred_region
        %s212 = ssub.s32 %s17, 1
        %s213 = sand.u32 %s62, 1
        %s214 = scalar_lea.sflag [#allocation4], %s213
        %s215 = sand.u32 %s62, 1
        %s216 = smul.addr %s215, 64
        %s217 = scalar_lea.vmem [#allocation3], %s216
        // Predicated region
        $region29: #{tpu_custom_call.1} parent=27 // pred_check
          %p218 = pneg %p75
        $region30: #{tpu_custom_call.1} parent=27 // pred_check_branch
          %220 = sbr.rel (%p218) target = $region32
        $region31: #{tpu_custom_call.1} parent=27 // pred_region
          %222 = dma.done %s214, 1024
        $region32: #{tpu_custom_call.1} parent=27 // pred_fallthru
          _
        %s223 = sand.u32 %s94, 1
        %s224 = scalar_lea.sflag [#allocation7], %s223
        %s225 = sand.u32 %s94, 1
        %s226 = smul.addr %s225, 64
        %s227 = scalar_lea.vmem [#allocation6], %s226
        // Predicated region
        $region33: #{tpu_custom_call.1} parent=27 // pred_check
          %p228 = pneg %p107
        $region34: #{tpu_custom_call.1} parent=27 // pred_check_branch
          %230 = sbr.rel (%p228) target = $region36
        $region35: #{tpu_custom_call.1} parent=27 // pred_region
          %232 = dma.done %s224, 1024
        $region36: #{tpu_custom_call.1} parent=27 // pred_fallthru
          _
        %s233 = sand.u32 %s62, 1
        %s234 = scalar_lea.sflag [#allocation4], %s233
        %s235 = sand.u32 %s62, 1
        %s236 = smul.addr %s235, 64
        %s237 = scalar_lea.vmem [#allocation3], %s236
        %p238 = pneg %p75
        %p239 = pneg %p72
        %s240 = sand.u32 %s94, 1
        %s241 = scalar_lea.sflag [#allocation7], %s240
        %s242 = sand.u32 %s94, 1
        %s243 = smul.addr %s242, 64
        %s244 = scalar_lea.vmem [#allocation6], %s243
        %p245 = pneg %p107
        %p246 = pneg %p104
        %p247 = pneg %p135
        %p248 = pneg %p132
        %s249 = sand.u32 %s122, 1
        %s250 = scalar_lea.sflag [#allocation5], %s249
        %s251 = sand.u32 %s122, 1
        %s252 = smul.addr %s251, 4
        %s253 = scalar_lea.vmem [#allocation8], %s252
        %s254 = sadd.s32 %s29, %s31
        %s255 = smul.u32 2, %s254
        %s256 = sadd.s32 %s29, %s31
        %s257 = smul.u32 2, %s256
        %p259 = scmp.eq.s32.totalorder %s30, 0
        %p260 = scmp.eq.s32.totalorder %s31, 0
        %p261 = pnand %p259, %p260
        %p262 = pneg %p261
        // Predicated region
        $region37: #{tpu_custom_call.1} parent=27 // pred_check
          _
        $region38: #{tpu_custom_call.1} parent=27 // pred_check_branch
          %264 = sbr.rel (%p261) target = $region40
        $region39: #{tpu_custom_call.1} parent=27 // pred_region
          %vm265 = vcmask 27648
          %266 = vst.msk [vmem:[#allocation2] sm:$0xf] %vm265, 0.0
        $region40: #{tpu_custom_call.1} parent=27 // pred_fallthru
          _
        %v267 = vld [vmem:[%s217] sm:$0xff]
        %s268 = scalar_lea.vmem %s217, 16 [#allocation3]
        %v269 = vld [vmem:[%s268] sm:$0xff]
        %vm270 = vcmp.gt.f32.partialorder %v269, %v267
        %v271 = vsel %vm270, 1, 0
        %v272 = vsel %vm270, %v269, %v267
        %s273 = scalar_lea.vmem %s217, 32 [#allocation3]
        %v274 = vld [vmem:[%s273] sm:$0xff]
        %vm275 = vcmp.gt.f32.partialorder %v274, %v272
        %v276 = vsel %vm275, 2, %v271
        %v277 = vsel %vm275, %v274, %v272
        %s278 = scalar_lea.vmem %s217, 48 [#allocation3]
        %v279 = vld [vmem:[%s278] sm:$0xff]
        %vm280 = vcmp.gt.f32.partialorder %v279, %v277
        %v281 = vsel %vm280, 3, %v276
        %v282 = vld [vmem:[%s227] sm:$0xff]
        %s283 = scalar_lea.vmem %s227, 16 [#allocation6]
        %v284 = vld [vmem:[%s283] sm:$0xff]
        %vm285 = vcmp.gt.f32.partialorder %v284, %v282
        %v286 = vsel %vm285, 1, 0
        %v287 = vsel %vm285, %v284, %v282
        %s288 = scalar_lea.vmem %s227, 32 [#allocation6]
        %v289 = vld [vmem:[%s288] sm:$0xff]
        %vm290 = vcmp.gt.f32.partialorder %v289, %v287
        %v291 = vsel %vm290, 2, %v286
        %v292 = vsel %vm290, %v289, %v287
        %s293 = scalar_lea.vmem %s227, 48 [#allocation6]
        %v294 = vld [vmem:[%s293] sm:$0xff]
        %vm295 = vcmp.gt.f32.partialorder %v294, %v292
        %v296 = vsel %vm295, 3, %v291
        %v297 = vlaneseq
        %v298 = vshrl.u32 %v297, 7
        %v299 = vrot.slane %v296, 1
        %v300 = vrot.slane %v296, 2
        %v301 = vrot.slane %v296, 3
        %v302 = vrot.slane %v296, 4
        %v303 = vrot.slane %v296, 5
        %v304 = vrot.slane %v296, 6
        %v305 = vrot.slane %v296, 7
        %v306 = vperm.slane %v296, 0
        %v307 = vperm.slane %v299, 0
        %v308 = vperm.slane %v300, 0
        %v309 = vperm.slane %v301, 0
        %v310 = vperm.slane %v302, 0
        %v311 = vperm.slane %v303, 0
        %v312 = vperm.slane %v304, 0
        %v313 = vperm.slane %v305, 0
        %vm314 = vcmp.eq.s32.totalorder %v298, %v306
        %vm315 = vcmp.eq.s32.totalorder %v298, %v307
        %vm316 = vcmp.eq.s32.totalorder %v298, %v308
        %vm317 = vcmp.eq.s32.totalorder %v298, %v309
        %vm318 = vcmp.eq.s32.totalorder %v298, %v310
        %vm319 = vcmp.eq.s32.totalorder %v298, %v311
        %vm320 = vcmp.eq.s32.totalorder %v298, %v312
        %vm321 = vcmp.eq.s32.totalorder %v298, %v313
        %v322 = vsel %vm314, 1, 0
        %v323 = vsel %vm315, 1, 0
        %v324 = vsel %vm316, 1, 0
        %v325 = vsel %vm317, 1, 0
        %v326 = vsel %vm318, 1, 0
        %v327 = vsel %vm319, 1, 0
        %v328 = vsel %vm320, 1, 0
        %v329 = vsel %vm321, 1, 0
        %v330 = vcvt.s32.f32 %v322
        %v331 = vcvt.s32.f32 %v323
        %v332 = vcvt.s32.f32 %v324
        %v333 = vcvt.s32.f32 %v325
        %v334 = vcvt.s32.f32 %v326
        %v335 = vcvt.s32.f32 %v327
        %v336 = vcvt.s32.f32 %v328
        %v337 = vcvt.s32.f32 %v329
        %v338 = vpack.c.bf16 %v330, %v330
        %v339 = vpack.c.bf16 %v331, %v331
        %v340 = vpack.c.bf16 %v332, %v332
        %v341 = vpack.c.bf16 %v333, %v333
        %v342 = vpack.c.bf16 %v334, %v334
        %v343 = vpack.c.bf16 %v335, %v335
        %v344 = vpack.c.bf16 %v336, %v336
        %v345 = vpack.c.bf16 %v337, %v337
        %v346 = vrot.slane %v281, 1
        %v347 = vrot.slane %v281, 2
        %v348 = vrot.slane %v281, 3
        %v349 = vrot.slane %v281, 4
        %v350 = vrot.slane %v281, 5
        %v351 = vrot.slane %v281, 6
        %v352 = vrot.slane %v281, 7
        %v353 = vperm.slane %v281, 0
        %v354 = vperm.slane %v346, 0
        %v355 = vperm.slane %v347, 0
        %v356 = vperm.slane %v348, 0
        %v357 = vperm.slane %v349, 0
        %v358 = vperm.slane %v350, 0
        %v359 = vperm.slane %v351, 0
        %v360 = vperm.slane %v352, 0
        %vm361 = vcmp.eq.s32.totalorder %v298, %v353
        %vm362 = vcmp.eq.s32.totalorder %v298, %v354
        %vm363 = vcmp.eq.s32.totalorder %v298, %v355
        %vm364 = vcmp.eq.s32.totalorder %v298, %v356
        %vm365 = vcmp.eq.s32.totalorder %v298, %v357
        %vm366 = vcmp.eq.s32.totalorder %v298, %v358
        %vm367 = vcmp.eq.s32.totalorder %v298, %v359
        %vm368 = vcmp.eq.s32.totalorder %v298, %v360
        %v369 = vsel %vm361, 1, 0
        %v370 = vsel %vm362, 1, 0
        %v371 = vsel %vm363, 1, 0
        %v372 = vsel %vm364, 1, 0
        %v373 = vsel %vm365, 1, 0
        %v374 = vsel %vm366, 1, 0
        %v375 = vsel %vm367, 1, 0
        %v376 = vsel %vm368, 1, 0
        %v377 = vcvt.s32.f32 %v369
        %v378 = vcvt.s32.f32 %v370
        %v379 = vcvt.s32.f32 %v371
        %v380 = vcvt.s32.f32 %v372
        %v381 = vcvt.s32.f32 %v373
        %v382 = vcvt.s32.f32 %v374
        %v383 = vcvt.s32.f32 %v375
        %v384 = vcvt.s32.f32 %v376
        %v385 = vpack.c.bf16 %v377, %v377
        %v386 = vpack.c.bf16 %v378, %v378
        %v387 = vpack.c.bf16 %v379, %v379
        %v388 = vpack.c.bf16 %v380, %v380
        %v389 = vpack.c.bf16 %v381, %v381
        %v390 = vpack.c.bf16 %v382, %v382
        %v391 = vpack.c.bf16 %v383, %v383
        %v392 = vpack.c.bf16 %v384, %v384
        %vm393 = vcmask 130048
        %v395 = vsel %vm393, %v338, 0
        %v398 = vsel %vm393, %v385, 0
        %400 = vmatpush.bf16.xpose.msra.mxu0 0
        %401 = vmatpush.bf16.xpose.msra.mxu0 0
        %402 = vmatpush.bf16.xpose.msra.mxu0 0
        %403 = vmatpush.bf16.xpose.msra.mxu0 0
        %404 = vmatpush.bf16.xpose.msra.mxu0 0
        %405 = vmatpush.bf16.xpose.msra.mxu0 0
        %406 = vmatpush.bf16.xpose.msra.mxu0 0
        %407 = vmatpush.bf16.xpose.msra.mxu0 %v398
        %408 = vmatmul.bf16.gmra.mxu0 %v395
        %v409 = vpop.f32.mrf.mxu0
        %v410 = vadd.f32 0.0, %v409
        %v411 = vpop.f32.mrf.mxu0
        %412 = vdwg.mxu0
        %v414 = vsel %vm393, %v339, 0
        %v417 = vsel %vm393, %v386, 0
        %419 = vmatpush.bf16.xpose.msra.mxu0 0
        %420 = vmatpush.bf16.xpose.msra.mxu0 0
        %421 = vmatpush.bf16.xpose.msra.mxu0 0
        %422 = vmatpush.bf16.xpose.msra.mxu0 0
        %423 = vmatpush.bf16.xpose.msra.mxu0 0
        %424 = vmatpush.bf16.xpose.msra.mxu0 0
        %425 = vmatpush.bf16.xpose.msra.mxu0 0
        %426 = vmatpush.bf16.xpose.msra.mxu0 %v417
        %427 = vmatmul.bf16.gmra.mxu0 %v414
        %v428 = vpop.f32.mrf.mxu0
        %v429 = vadd.f32 0.0, %v428
        %v430 = vpop.f32.mrf.mxu0
        %431 = vdwg.mxu0
        %v433 = vsel %vm393, %v340, 0
        %v436 = vsel %vm393, %v387, 0
        %438 = vmatpush.bf16.xpose.msra.mxu0 0
        %439 = vmatpush.bf16.xpose.msra.mxu0 0
        %440 = vmatpush.bf16.xpose.msra.mxu0 0
        %441 = vmatpush.bf16.xpose.msra.mxu0 0
        %442 = vmatpush.bf16.xpose.msra.mxu0 0
        %443 = vmatpush.bf16.xpose.msra.mxu0 0
        %444 = vmatpush.bf16.xpose.msra.mxu0 0
        %445 = vmatpush.bf16.xpose.msra.mxu0 %v436
        %446 = vmatmul.bf16.gmra.mxu0 %v433
        %v447 = vpop.f32.mrf.mxu0
        %v448 = vadd.f32 0.0, %v447
        %v449 = vpop.f32.mrf.mxu0
        %450 = vdwg.mxu0
        %v452 = vsel %vm393, %v341, 0
        %v455 = vsel %vm393, %v388, 0
        %457 = vmatpush.bf16.xpose.msra.mxu0 0
        %458 = vmatpush.bf16.xpose.msra.mxu0 0
        %459 = vmatpush.bf16.xpose.msra.mxu0 0
        %460 = vmatpush.bf16.xpose.msra.mxu0 0
        %461 = vmatpush.bf16.xpose.msra.mxu0 0
        %462 = vmatpush.bf16.xpose.msra.mxu0 0
        %463 = vmatpush.bf16.xpose.msra.mxu0 0
        %464 = vmatpush.bf16.xpose.msra.mxu0 %v455
        %465 = vmatmul.bf16.gmra.mxu0 %v452
        %v466 = vpop.f32.mrf.mxu0
        %v467 = vadd.f32 0.0, %v466
        %v468 = vpop.f32.mrf.mxu0
        %469 = vdwg.mxu0
        %v471 = vsel %vm393, %v342, 0
        %v474 = vsel %vm393, %v389, 0
        %476 = vmatpush.bf16.xpose.msra.mxu0 0
        %477 = vmatpush.bf16.xpose.msra.mxu0 0
        %478 = vmatpush.bf16.xpose.msra.mxu0 0
        %479 = vmatpush.bf16.xpose.msra.mxu0 0
        %480 = vmatpush.bf16.xpose.msra.mxu0 0
        %481 = vmatpush.bf16.xpose.msra.mxu0 0
        %482 = vmatpush.bf16.xpose.msra.mxu0 0
        %483 = vmatpush.bf16.xpose.msra.mxu0 %v474
        %484 = vmatmul.bf16.gmra.mxu0 %v471
        %v485 = vpop.f32.mrf.mxu0
        %v486 = vadd.f32 0.0, %v485
        %v487 = vpop.f32.mrf.mxu0
        %488 = vdwg.mxu0
        %v490 = vsel %vm393, %v343, 0
        %v493 = vsel %vm393, %v390, 0
        %495 = vmatpush.bf16.xpose.msra.mxu0 0
        %496 = vmatpush.bf16.xpose.msra.mxu0 0
        %497 = vmatpush.bf16.xpose.msra.mxu0 0
        %498 = vmatpush.bf16.xpose.msra.mxu0 0
        %499 = vmatpush.bf16.xpose.msra.mxu0 0
        %500 = vmatpush.bf16.xpose.msra.mxu0 0
        %501 = vmatpush.bf16.xpose.msra.mxu0 0
        %502 = vmatpush.bf16.xpose.msra.mxu0 %v493
        %503 = vmatmul.bf16.gmra.mxu0 %v490
        %v504 = vpop.f32.mrf.mxu0
        %v505 = vadd.f32 0.0, %v504
        %v506 = vpop.f32.mrf.mxu0
        %507 = vdwg.mxu0
        %v509 = vsel %vm393, %v344, 0
        %v512 = vsel %vm393, %v391, 0
        %514 = vmatpush.bf16.xpose.msra.mxu0 0
        %515 = vmatpush.bf16.xpose.msra.mxu0 0
        %516 = vmatpush.bf16.xpose.msra.mxu0 0
        %517 = vmatpush.bf16.xpose.msra.mxu0 0
        %518 = vmatpush.bf16.xpose.msra.mxu0 0
        %519 = vmatpush.bf16.xpose.msra.mxu0 0
        %520 = vmatpush.bf16.xpose.msra.mxu0 0
        %521 = vmatpush.bf16.xpose.msra.mxu0 %v512
        %522 = vmatmul.bf16.gmra.mxu0 %v509
        %v523 = vpop.f32.mrf.mxu0
        %v524 = vadd.f32 0.0, %v523
        %v525 = vpop.f32.mrf.mxu0
        %526 = vdwg.mxu0
        %v528 = vsel %vm393, %v345, 0
        %v531 = vsel %vm393, %v392, 0
        %533 = vmatpush.bf16.xpose.msra.mxu0 0
        %534 = vmatpush.bf16.xpose.msra.mxu0 0
        %535 = vmatpush.bf16.xpose.msra.mxu0 0
        %536 = vmatpush.bf16.xpose.msra.mxu0 0
        %537 = vmatpush.bf16.xpose.msra.mxu0 0
        %538 = vmatpush.bf16.xpose.msra.mxu0 0
        %539 = vmatpush.bf16.xpose.msra.mxu0 0
        %540 = vmatpush.bf16.xpose.msra.mxu0 %v531
        %541 = vmatmul.bf16.gmra.mxu0 %v528
        %v542 = vpop.f32.mrf.mxu0
        %v543 = vadd.f32 0.0, %v542
        %v544 = vpop.f32.mrf.mxu0
        %545 = vdwg.mxu0
        %vm546 = vcmask 27648
        %v547 = vsel %vm546, %v410, 0.0
        %v548 = vsel %vm546, %v429, 0.0
        %v549 = vadd.f32 %v547, %v548
        %v550 = vsel %vm546, %v448, 0.0
        %v551 = vadd.f32 %v549, %v550
        %v552 = vsel %vm546, %v467, 0.0
        %v553 = vadd.f32 %v551, %v552
        %v554 = vsel %vm546, %v486, 0.0
        %v555 = vadd.f32 %v553, %v554
        %v556 = vsel %vm546, %v505, 0.0
        %v557 = vadd.f32 %v555, %v556
        %v558 = vsel %vm546, %v524, 0.0
        %v559 = vadd.f32 %v557, %v558
        %v560 = vsel %vm546, %v543, 0.0
        %v561 = vadd.f32 %v559, %v560
        %v562 = vadd.f32 %v561, 0.0
        %v563 = vld [vmem:[%s217 + $0x8] sm:$0xff]
        %v564 = vld [vmem:[%s268 + $0x8] sm:$0xff]
        %vm565 = vcmp.gt.f32.partialorder %v564, %v563
        %v566 = vsel %vm565, 1, 0
        %v567 = vsel %vm565, %v564, %v563
        %v568 = vld [vmem:[%s273 + $0x8] sm:$0xff]
        %vm569 = vcmp.gt.f32.partialorder %v568, %v567
        %v570 = vsel %vm569, 2, %v566
        %v571 = vsel %vm569, %v568, %v567
        %v572 = vld [vmem:[%s278 + $0x8] sm:$0xff]
        %vm573 = vcmp.gt.f32.partialorder %v572, %v571
        %v574 = vsel %vm573, 3, %v570
        %v575 = vld [vmem:[%s227 + $0x8] sm:$0xff]
        %v576 = vld [vmem:[%s283 + $0x8] sm:$0xff]
        %vm577 = vcmp.gt.f32.partialorder %v576, %v575
        %v578 = vsel %vm577, 1, 0
        %v579 = vsel %vm577, %v576, %v575
        %v580 = vld [vmem:[%s288 + $0x8] sm:$0xff]
        %vm581 = vcmp.gt.f32.partialorder %v580, %v579
        %v582 = vsel %vm581, 2, %v578
        %v583 = vsel %vm581, %v580, %v579
        %v584 = vld [vmem:[%s293 + $0x8] sm:$0xff]
        %vm585 = vcmp.gt.f32.partialorder %v584, %v583
        %v586 = vsel %vm585, 3, %v582
        %v587 = vrot.slane %v586, 1
        %v588 = vrot.slane %v586, 2
        %v589 = vrot.slane %v586, 3
        %v590 = vrot.slane %v586, 4
        %v591 = vrot.slane %v586, 5
        %v592 = vrot.slane %v586, 6
        %v593 = vrot.slane %v586, 7
        %v594 = vperm.slane %v586, 0
        %v595 = vperm.slane %v587, 0
        %v596 = vperm.slane %v588, 0
        %v597 = vperm.slane %v589, 0
        %v598 = vperm.slane %v590, 0
        %v599 = vperm.slane %v591, 0
        %v600 = vperm.slane %v592, 0
        %v601 = vperm.slane %v593, 0
        %vm602 = vcmp.eq.s32.totalorder %v298, %v594
        %vm603 = vcmp.eq.s32.totalorder %v298, %v595
        %vm604 = vcmp.eq.s32.totalorder %v298, %v596
        %vm605 = vcmp.eq.s32.totalorder %v298, %v597
        %vm606 = vcmp.eq.s32.totalorder %v298, %v598
        %vm607 = vcmp.eq.s32.totalorder %v298, %v599
        %vm608 = vcmp.eq.s32.totalorder %v298, %v600
        %vm609 = vcmp.eq.s32.totalorder %v298, %v601
        %v610 = vsel %vm602, 1, 0
        %v611 = vsel %vm603, 1, 0
        %v612 = vsel %vm604, 1, 0
        %v613 = vsel %vm605, 1, 0
        %v614 = vsel %vm606, 1, 0
        %v615 = vsel %vm607, 1, 0
        %v616 = vsel %vm608, 1, 0
        %v617 = vsel %vm609, 1, 0
        %v618 = vcvt.s32.f32 %v610
        %v619 = vcvt.s32.f32 %v611
        %v620 = vcvt.s32.f32 %v612
        %v621 = vcvt.s32.f32 %v613
        %v622 = vcvt.s32.f32 %v614
        %v623 = vcvt.s32.f32 %v615
        %v624 = vcvt.s32.f32 %v616
        %v625 = vcvt.s32.f32 %v617
        %v626 = vpack.c.bf16 %v618, %v618
        %v627 = vpack.c.bf16 %v619, %v619
        %v628 = vpack.c.bf16 %v620, %v620
        %v629 = vpack.c.bf16 %v621, %v621
        %v630 = vpack.c.bf16 %v622, %v622
        %v631 = vpack.c.bf16 %v623, %v623
        %v632 = vpack.c.bf16 %v624, %v624
        %v633 = vpack.c.bf16 %v625, %v625
        %v634 = vrot.slane %v574, 1
        %v635 = vrot.slane %v574, 2
        %v636 = vrot.slane %v574, 3
        %v637 = vrot.slane %v574, 4
        %v638 = vrot.slane %v574, 5
        %v639 = vrot.slane %v574, 6
        %v640 = vrot.slane %v574, 7
        %v641 = vperm.slane %v574, 0
        %v642 = vperm.slane %v634, 0
        %v643 = vperm.slane %v635, 0
        %v644 = vperm.slane %v636, 0
        %v645 = vperm.slane %v637, 0
        %v646 = vperm.slane %v638, 0
        %v647 = vperm.slane %v639, 0
        %v648 = vperm.slane %v640, 0
        %vm649 = vcmp.eq.s32.totalorder %v298, %v641
        %vm650 = vcmp.eq.s32.totalorder %v298, %v642
        %vm651 = vcmp.eq.s32.totalorder %v298, %v643
        %vm652 = vcmp.eq.s32.totalorder %v298, %v644
        %vm653 = vcmp.eq.s32.totalorder %v298, %v645
        %vm654 = vcmp.eq.s32.totalorder %v298, %v646
        %vm655 = vcmp.eq.s32.totalorder %v298, %v647
        %vm656 = vcmp.eq.s32.totalorder %v298, %v648
        %v657 = vsel %vm649, 1, 0
        %v658 = vsel %vm650, 1, 0
        %v659 = vsel %vm651, 1, 0
        %v660 = vsel %vm652, 1, 0
        %v661 = vsel %vm653, 1, 0
        %v662 = vsel %vm654, 1, 0
        %v663 = vsel %vm655, 1, 0
        %v664 = vsel %vm656, 1, 0
        %v665 = vcvt.s32.f32 %v657
        %v666 = vcvt.s32.f32 %v658
        %v667 = vcvt.s32.f32 %v659
        %v668 = vcvt.s32.f32 %v660
        %v669 = vcvt.s32.f32 %v661
        %v670 = vcvt.s32.f32 %v662
        %v671 = vcvt.s32.f32 %v663
        %v672 = vcvt.s32.f32 %v664
        %v673 = vpack.c.bf16 %v665, %v665
        %v674 = vpack.c.bf16 %v666, %v666
        %v675 = vpack.c.bf16 %v667, %v667
        %v676 = vpack.c.bf16 %v668, %v668
        %v677 = vpack.c.bf16 %v669, %v669
        %v678 = vpack.c.bf16 %v670, %v670
        %v679 = vpack.c.bf16 %v671, %v671
        %v680 = vpack.c.bf16 %v672, %v672
        %v682 = vsel %vm393, %v626, 0
        %v685 = vsel %vm393, %v673, 0
        %687 = vmatpush.bf16.xpose.msra.mxu0 0
        %688 = vmatpush.bf16.xpose.msra.mxu0 0
        %689 = vmatpush.bf16.xpose.msra.mxu0 0
        %690 = vmatpush.bf16.xpose.msra.mxu0 0
        %691 = vmatpush.bf16.xpose.msra.mxu0 0
        %692 = vmatpush.bf16.xpose.msra.mxu0 0
        %693 = vmatpush.bf16.xpose.msra.mxu0 0
        %694 = vmatpush.bf16.xpose.msra.mxu0 %v685
        %695 = vmatmul.bf16.gmra.mxu0 %v682
        %v696 = vpop.f32.mrf.mxu0
        %v697 = vadd.f32 0.0, %v696
        %v698 = vpop.f32.mrf.mxu0
        %699 = vdwg.mxu0
        %v701 = vsel %vm393, %v627, 0
        %v704 = vsel %vm393, %v674, 0
        %706 = vmatpush.bf16.xpose.msra.mxu0 0
        %707 = vmatpush.bf16.xpose.msra.mxu0 0
        %708 = vmatpush.bf16.xpose.msra.mxu0 0
        %709 = vmatpush.bf16.xpose.msra.mxu0 0
        %710 = vmatpush.bf16.xpose.msra.mxu0 0
        %711 = vmatpush.bf16.xpose.msra.mxu0 0
        %712 = vmatpush.bf16.xpose.msra.mxu0 0
        %713 = vmatpush.bf16.xpose.msra.mxu0 %v704
        %714 = vmatmul.bf16.gmra.mxu0 %v701
        %v715 = vpop.f32.mrf.mxu0
        %v716 = vadd.f32 0.0, %v715
        %v717 = vpop.f32.mrf.mxu0
        %718 = vdwg.mxu0
        %v720 = vsel %vm393, %v628, 0
        %v723 = vsel %vm393, %v675, 0
        %725 = vmatpush.bf16.xpose.msra.mxu0 0
        %726 = vmatpush.bf16.xpose.msra.mxu0 0
        %727 = vmatpush.bf16.xpose.msra.mxu0 0
        %728 = vmatpush.bf16.xpose.msra.mxu0 0
        %729 = vmatpush.bf16.xpose.msra.mxu0 0
        %730 = vmatpush.bf16.xpose.msra.mxu0 0
        %731 = vmatpush.bf16.xpose.msra.mxu0 0
        %732 = vmatpush.bf16.xpose.msra.mxu0 %v723
        %733 = vmatmul.bf16.gmra.mxu0 %v720
        %v734 = vpop.f32.mrf.mxu0
        %v735 = vadd.f32 0.0, %v734
        %v736 = vpop.f32.mrf.mxu0
        %737 = vdwg.mxu0
        %v739 = vsel %vm393, %v629, 0
        %v742 = vsel %vm393, %v676, 0
        %744 = vmatpush.bf16.xpose.msra.mxu0 0
        %745 = vmatpush.bf16.xpose.msra.mxu0 0
        %746 = vmatpush.bf16.xpose.msra.mxu0 0
        %747 = vmatpush.bf16.xpose.msra.mxu0 0
        %748 = vmatpush.bf16.xpose.msra.mxu0 0
        %749 = vmatpush.bf16.xpose.msra.mxu0 0
        %750 = vmatpush.bf16.xpose.msra.mxu0 0
        %751 = vmatpush.bf16.xpose.msra.mxu0 %v742
        %752 = vmatmul.bf16.gmra.mxu0 %v739
        %v753 = vpop.f32.mrf.mxu0
        %v754 = vadd.f32 0.0, %v753
        %v755 = vpop.f32.mrf.mxu0
        %756 = vdwg.mxu0
        %v758 = vsel %vm393, %v630, 0
        %v761 = vsel %vm393, %v677, 0
        %763 = vmatpush.bf16.xpose.msra.mxu0 0
        %764 = vmatpush.bf16.xpose.msra.mxu0 0
        %765 = vmatpush.bf16.xpose.msra.mxu0 0
        %766 = vmatpush.bf16.xpose.msra.mxu0 0
        %767 = vmatpush.bf16.xpose.msra.mxu0 0
        %768 = vmatpush.bf16.xpose.msra.mxu0 0
        %769 = vmatpush.bf16.xpose.msra.mxu0 0
        %770 = vmatpush.bf16.xpose.msra.mxu0 %v761
        %771 = vmatmul.bf16.gmra.mxu0 %v758
        %v772 = vpop.f32.mrf.mxu0
        %v773 = vadd.f32 0.0, %v772
        %v774 = vpop.f32.mrf.mxu0
        %775 = vdwg.mxu0
        %v777 = vsel %vm393, %v631, 0
        %v780 = vsel %vm393, %v678, 0
        %782 = vmatpush.bf16.xpose.msra.mxu0 0
        %783 = vmatpush.bf16.xpose.msra.mxu0 0
        %784 = vmatpush.bf16.xpose.msra.mxu0 0
        %785 = vmatpush.bf16.xpose.msra.mxu0 0
        %786 = vmatpush.bf16.xpose.msra.mxu0 0
        %787 = vmatpush.bf16.xpose.msra.mxu0 0
        %788 = vmatpush.bf16.xpose.msra.mxu0 0
        %789 = vmatpush.bf16.xpose.msra.mxu0 %v780
        %790 = vmatmul.bf16.gmra.mxu0 %v777
        %v791 = vpop.f32.mrf.mxu0
        %v792 = vadd.f32 0.0, %v791
        %v793 = vpop.f32.mrf.mxu0
        %794 = vdwg.mxu0
        %v796 = vsel %vm393, %v632, 0
        %v799 = vsel %vm393, %v679, 0
        %801 = vmatpush.bf16.xpose.msra.mxu0 0
        %802 = vmatpush.bf16.xpose.msra.mxu0 0
        %803 = vmatpush.bf16.xpose.msra.mxu0 0
        %804 = vmatpush.bf16.xpose.msra.mxu0 0
        %805 = vmatpush.bf16.xpose.msra.mxu0 0
        %806 = vmatpush.bf16.xpose.msra.mxu0 0
        %807 = vmatpush.bf16.xpose.msra.mxu0 0
        %808 = vmatpush.bf16.xpose.msra.mxu0 %v799
        %809 = vmatmul.bf16.gmra.mxu0 %v796
        %v810 = vpop.f32.mrf.mxu0
        %v811 = vadd.f32 0.0, %v810
        %v812 = vpop.f32.mrf.mxu0
        %813 = vdwg.mxu0
        %v815 = vsel %vm393, %v633, 0
        %v818 = vsel %vm393, %v680, 0
        %820 = vmatpush.bf16.xpose.msra.mxu0 0
        %821 = vmatpush.bf16.xpose.msra.mxu0 0
        %822 = vmatpush.bf16.xpose.msra.mxu0 0
        %823 = vmatpush.bf16.xpose.msra.mxu0 0
        %824 = vmatpush.bf16.xpose.msra.mxu0 0
        %825 = vmatpush.bf16.xpose.msra.mxu0 0
        %826 = vmatpush.bf16.xpose.msra.mxu0 0
        %827 = vmatpush.bf16.xpose.msra.mxu0 %v818
        %828 = vmatmul.bf16.gmra.mxu0 %v815
        %v829 = vpop.f32.mrf.mxu0
        %v830 = vadd.f32 0.0, %v829
        %v831 = vpop.f32.mrf.mxu0
        %832 = vdwg.mxu0
        %v833 = vsel %vm546, %v697, 0.0
        %v834 = vsel %vm546, %v716, 0.0
        %v835 = vadd.f32 %v833, %v834
        %v836 = vsel %vm546, %v735, 0.0
        %v837 = vadd.f32 %v835, %v836
        %v838 = vsel %vm546, %v754, 0.0
        %v839 = vadd.f32 %v837, %v838
        %v840 = vsel %vm546, %v773, 0.0
        %v841 = vadd.f32 %v839, %v840
        %v842 = vsel %vm546, %v792, 0.0
        %v843 = vadd.f32 %v841, %v842
        %v844 = vsel %vm546, %v811, 0.0
        %v845 = vadd.f32 %v843, %v844
        %v846 = vsel %vm546, %v830, 0.0
        %v847 = vadd.f32 %v845, %v846
        %v848 = vadd.f32 %v562, %v847
        %v849 = vld [vmem:[#allocation2] sm:$0xf]
        %v850 = vadd.f32 %v849, %v848
        %851 = vst.msk [vmem:[#allocation2] sm:$0xf] %vm546, %v850
        // Predicated region
        $region41: #{tpu_custom_call.1} parent=27 // pred_check
          _
        $region42: #{tpu_custom_call.1} parent=27 // pred_check_branch
          %853 = sbr.rel (%p261) target = $region44
        $region43: #{tpu_custom_call.1} parent=27 // pred_region
          %v854 = vld [vmem:[#allocation2] sm:$0xf]
          %855 = vst.msk [vmem:[%s253] sm:$0xf] %vm546, %v854
        $region44: #{tpu_custom_call.1} parent=27 // pred_fallthru
          _
        %s856 = sand.u32 %s122, 1
        %s857 = scalar_lea.sflag [#allocation5], %s856
        %s858 = sand.u32 %s122, 1
        %s859 = smul.addr %s858, 4
        %s860 = scalar_lea.vmem [#allocation8], %s859
        // Predicated region
        $region45: #{tpu_custom_call.1} parent=27 // pred_check
          %p861 = pneg %p132
        $region46: #{tpu_custom_call.1} parent=27 // pred_check_branch
          %863 = sbr.rel (%p861) target = $region48
        $region47: #{tpu_custom_call.1} parent=27 // pred_region
          %865 = vsyncadd %s857, 0
          %s866 = sadd.s32 %s29, %s28
          %s867 = smul.addr %s866, 4
          %s868 = scalar_lea.hbm %s2, %s867
          %s870 = sshll.u32 %s860, 4
          %s871 = int_to_ptr.vmem [resolvable:$true] %s870
          %s872 = sshll.u32 %s868, 4
          %s873 = int_to_ptr.hbm [resolvable:$true] %s872
          %875 = dma.vmem_to_hbm [thread:$0]  %s871, 64, %s873, %s857
        $region48: #{tpu_custom_call.1} parent=27 // pred_fallthru
          _
      $region28: #{tpu_custom_call.1} parent=5 // pred_fallthru
        _
      %p876 = scmp.le.s32.totalorder 2, %s17
      // Predicated region
      $region49: #{tpu_custom_call.1} parent=5 // pred_check
        %p877 = pneg %p876
      $region50: #{tpu_custom_call.1} parent=5 // pred_check_branch
        %879 = sbr.rel (%p877) target = $region52
      $region51: #{tpu_custom_call.1} parent=5 // pred_region
        %s880 = ssub.s32 %s17, 2
        // Predicated region
        $region53: #{tpu_custom_call.1} parent=51 // pred_check
          %p881 = pneg %p138
        $region54: #{tpu_custom_call.1} parent=51 // pred_check_branch
          %883 = sbr.rel (%p881) target = $region56
        $region55: #{tpu_custom_call.1} parent=51 // pred_region
          %s884 = sand.u32 %s123, 1
          %s885 = scalar_lea.sflag [#allocation5], %s884
          %s886 = sand.u32 %s123, 1
          %s887 = smul.addr %s886, 4
          %s888 = scalar_lea.vmem [#allocation8], %s887
          %890 = dma.done %s885, 64
        $region56: #{tpu_custom_call.1} parent=51 // pred_fallthru
          _
      $region52: #{tpu_custom_call.1} parent=5 // pred_fallthru
        _
    $region6: #{tpu_custom_call.1} parent=1 // loop_footer
      %s21 = sadd.s32 1, %s17
    $region7: #{tpu_custom_call.1} parent=1 // loop_footer_branch
      %16 = sbr.rel target = $region3
    $region8: #{tpu_custom_call.1} parent=1 // loop_exit
      _
    %891 = vsyncpa [#allocation4], 1
    %s892 = scalar_lea.sflag [#allocation4], 1
    %893 = vsyncpa %s892, 1
    %894 = vsyncpa [#allocation7], 1
    %s895 = scalar_lea.sflag [#allocation7], 1
    %896 = vsyncpa %s895, 1
    %897 = vsyncpa [#allocation5], 1
    %s898 = scalar_lea.sflag [#allocation5], 1
    %899 = vsyncpa %s898, 1

</llo_original>
